<compile_context>
chip_gen: v5e
topology: v5e:2x2
jax: 0.10.0
libtpu: 0.0.40
codegen_flags: <defaults>
</compile_context>

<pallas_src>
import functools

import jax
import jax.numpy as jnp
from jax.experimental import pallas as pl
from jax.experimental.pallas import tpu as pltpu

TILE = 128  # TM = TN = TK; every padded dim is a multiple of this (lane-dense blocks)


def _round_up(x, m):
    return (x + m - 1) // m * m


def _pad2d(x, rows, cols):
    return jnp.pad(x, ((0, rows - x.shape[0]), (0, cols - x.shape[1])))


# ----------------------------- Pallas kernels ------------------------------ #

def _project_kernel(x_ref, w_ref, ns_ref, y_ref, acc_ref):
    """Y = norm_src * (X @ W), tiled over (src, f_out, f_in); f_in is the reduction axis."""
    k = pl.program_id(2)

    @pl.when(k == 0)
    def _():
        acc_ref[...] = jnp.zeros_like(acc_ref)

    acc_ref[...] += jnp.dot(x_ref[...], w_ref[...],
                            preferred_element_type=jnp.float32)

    @pl.when(k == pl.num_programs(2) - 1)
    def _():
        y_ref[...] = (acc_ref[...] * ns_ref[...]).astype(y_ref.dtype)


def _aggregate_kernel(a_ref, y_ref, nd_ref, b_ref, o_ref, acc_ref, *, apply_relu):
    """out = act( sum_{rel,k} norm_dst_rel * (A_rel^T @ Y_rel) + bias_sum )."""
    r = pl.program_id(2)
    k = pl.program_id(3)

    @pl.when(jnp.logical_and(r == 0, k == 0))
    def _():
        acc_ref[...] = jnp.zeros_like(acc_ref)

    part = jnp.dot(a_ref[0], y_ref[0], preferred_element_type=jnp.float32)
    # per-relation dst norm; distributes over the k-sum, rides in VPU slots under the MXU
    acc_ref[...] += part * nd_ref[0]

    @pl.when(jnp.logical_and(r == pl.num_programs(2) - 1,
                             k == pl.num_programs(3) - 1))
    def _():
        out = acc_ref[...] + b_ref[...]
        if apply_relu:
            out = jnp.maximum(out, 0.0)
        o_ref[...] = out.astype(o_ref.dtype)


# ----------------------------- kernel wrappers ------------------------------ #

def project(x, w, norm_src, *, out_dtype=jnp.bfloat16):
    """Per-relation projection: norm_src * (X @ W), computed once per relation."""
    n_src, f_in = x.shape
    f_out = w.shape[1]
    grid = (n_src // TILE, f_out // TILE, f_in // TILE)
    return pl.pallas_call(
        _project_kernel,
        out_shape=jax.ShapeDtypeStruct((n_src, f_out), out_dtype),
        grid=grid,
        in_specs=[
            pl.BlockSpec((TILE, TILE), lambda i, j, k: (i, k)),   # X
            pl.BlockSpec((TILE, TILE), lambda i, j, k: (k, j)),   # W
            pl.BlockSpec((TILE, 1),    lambda i, j, k: (i, 0)),   # norm_src (col vector)
        ],
        out_specs=pl.BlockSpec((TILE, TILE), lambda i, j, k: (i, j)),
        scratch_shapes=[pltpu.VMEM((TILE, TILE), jnp.float32)],
        compiler_params=pltpu.CompilerParams(
            dimension_semantics=("parallel", "parallel", "arbitrary")),
    )(x, w.astype(x.dtype), norm_src)


def aggregate(a_stack, y_stack, nd_stack, bias_row, *, apply_relu, out_dtype):
    """Fused per-dst-type aggregation: relation sum + dst norm + bias (+ ReLU)."""
    n_rel, n_dst, k_tot = a_stack.shape
    f_out = y_stack.shape[2]
    grid = (n_dst // TILE, f_out // TILE, n_rel, k_tot // TILE)
    kern = functools.partial(_aggregate_kernel, apply_relu=apply_relu)
    return pl.pallas_call(
        kern,
        out_shape=jax.ShapeDtypeStruct((n_dst, f_out), out_dtype),
        grid=grid,
        in_specs=[
            pl.BlockSpec((1, TILE, TILE), lambda i, j, r, k: (r, i, k)),  # A^T (bf16 0/1)
            pl.BlockSpec((1, TILE, TILE), lambda i, j, r, k: (r, k, j)),  # Y   (bf16)
            pl.BlockSpec((1, TILE, 1),    lambda i, j, r, k: (r, i, 0)),  # norm_dst per rel
            pl.BlockSpec((1, TILE),       lambda i, j, r, k: (0, j)),     # summed bias row
        ],
        out_specs=pl.BlockSpec((TILE, TILE), lambda i, j, r, k: (i, j)),
        scratch_shapes=[pltpu.VMEM((TILE, TILE), jnp.float32)],
        compiler_params=pltpu.CompilerParams(
            dimension_semantics=("parallel", "parallel", "arbitrary", "arbitrary")),
    )(a_stack, y_stack, nd_stack, bias_row)


# ----------------------------- RGCN wrapper -------------------------------- #

def build_graph(adj_ui):
    """Bipartite user<->item heterograph from a dense user->item adjacency (0/1 float)."""
    n_user, n_item = adj_ui.shape
    nu_pad = _round_up(n_user, TILE)
    ni_pad = _round_up(n_item, TILE)
    adj_pad = jnp.zeros((nu_pad, ni_pad), jnp.float32).at[:n_user, :n_item].set(adj_ui)

    deg_u = jnp.clip(adj_pad.sum(axis=1, keepdims=True), 1.0)    # (nu_pad, 1)
    deg_i = jnp.clip(adj_pad.sum(axis=0, keepdims=True).T, 1.0)  # (ni_pad, 1)
    norm_u = deg_u ** -0.5
    norm_i = deg_i ** -0.5

    a_ui_t = adj_pad.T.astype(jnp.bfloat16)   # dst=item, src=user : [ni_pad, nu_pad]
    a_iu_t = adj_pad.astype(jnp.bfloat16)     # dst=user, src=item : [nu_pad, ni_pad]

    relations = {
        "rates":    dict(src="user", dst="item", norm_src=norm_u),
        "rated-by": dict(src="item", dst="user", norm_src=norm_i),
    }
    # Per-dst-type grouping; relation order defines the stacking along the relation axis.
    dst_groups = {
        "item": dict(rels=["rates"],    a_stack=a_ui_t[None], nd_stack=norm_i[None],
                     n_dst=n_item, k_pad=nu_pad),
        "user": dict(rels=["rated-by"], a_stack=a_iu_t[None], nd_stack=norm_u[None],
                     n_dst=n_user, k_pad=ni_pad),
    }
    node_pad = {"user": nu_pad, "item": ni_pad}
    return dict(relations=relations, dst=dst_groups, node_pad=node_pad)


def hetero_conv(graph, feats, layer_params, *, f_out_pad, apply_relu, out_dtype):
    """dglnn.HeteroGraphConv({rel: GraphConv}, aggregate='sum') — two fused phases."""
    # Phase 1: per-relation projection Y = norm_src * (X @ W) (computed once per relation).
    y = {}
    for rel, info in graph["relations"].items():
        w, _b = layer_params[rel]
        x = feats[info["src"]]
        w_p = _pad2d(w, x.shape[1], f_out_pad)
        y[rel] = project(x, w_p, info["norm_src"])

    # Phase 2: per-dst-type fused aggregation (relation sum + dst norm + bias + optional ReLU).
    out = {}
    for dst_t, g in graph["dst"].items():
        k_pad = g["k_pad"]
        y_stack = jnp.stack(
            [jnp.pad(y[r], ((0, k_pad - y[r].shape[0]), (0, 0))) for r in g["rels"]])
        b_sum = sum(layer_params[r][1] for r in g["rels"])
        b_row = jnp.zeros((1, f_out_pad), jnp.float32).at[0, :b_sum.shape[0]].set(b_sum)
        out[dst_t] = aggregate(g["a_stack"], y_stack, g["nd_stack"], b_row,
                               apply_relu=apply_relu, out_dtype=out_dtype)
    return out


def rgcn_forward(graph, inputs, params, *, hid_pad, out_pad):
    h = hetero_conv(graph, inputs, params["conv1"],
                    f_out_pad=hid_pad, apply_relu=True, out_dtype=jnp.bfloat16)
    h = hetero_conv(graph, h, params["conv2"],
                    f_out_pad=out_pad, apply_relu=False, out_dtype=jnp.float32)
    return h


# ----------------------------- reference / setup ---------------------------- #

def reference_forward(adj_ui, inputs, params):
    """Pure-JAX f32 reference with DGL GraphConv(norm='both') + HeteroGraphConv(sum) semantics."""
    deg_u = jnp.clip(adj_ui.sum(axis=1, keepdims=True), 1.0)
    deg_i = jnp.clip(adj_ui.sum(axis=0, keepdims=True).T, 1.0)
    nu, ni = deg_u ** -0.5, deg_i ** -0.5

    def gconv(a_t, x, w, b, ns, nd):
        return nd * (a_t @ (ns * (x @ w))) + b

    def layer(p, xu, xi):
        w_r, b_r = p["rates"]
        w_rb, b_rb = p["rated-by"]
        return (gconv(adj_ui, xi, w_rb, b_rb, ni, nu),     # user output
                gconv(adj_ui.T, xu, w_r, b_r, nu, ni))     # item output

    hu, hi = layer(params["conv1"], inputs["user"], inputs["item"])
    hu, hi = jnp.maximum(hu, 0.0), jnp.maximum(hi, 0.0)
    ou, oi = layer(params["conv2"], hu, hi)
    return {"user": ou, "item": oi}


def _xavier_uniform(key, fan_in, fan_out):
    limit = (6.0 / (fan_in + fan_out)) ** 0.5
    return jax.random.uniform(key, (fan_in, fan_out), jnp.float32, -limit, limit)


if __name__ == "__main__":
    n_user, n_item = 8, 16
    in_feats, hid_feats, out_feats = 16, 32, 8
    rel_names = ["rates", "rated-by"]

    key = jax.random.PRNGKey(0)
    k_adj, k_u, k_i = jax.random.split(key, 3)

    # synthetic ratings -> dense bipartite adjacency (0/1)
    adj_ui = jax.random.bernoulli(k_adj, 0.3, (n_user, n_item)).astype(jnp.float32)

    inputs_raw = {
        "user": jax.random.normal(k_u, (n_user, in_feats), jnp.float32),
        "item": jax.random.normal(k_i, (n_item, in_feats), jnp.float32),
    }

    # deterministic parameter init (DGL GraphConv: xavier_uniform weight, zero bias)
    wkeys = jax.random.split(jax.random.PRNGKey(42), 2 * len(rel_names))
    params = {
        "conv1": {rel: (_xavier_uniform(wkeys[i], in_feats, hid_feats),
                        jnp.zeros((hid_feats,), jnp.float32))
                  for i, rel in enumerate(rel_names)},
        "conv2": {rel: (_xavier_uniform(wkeys[len(rel_names) + i], hid_feats, out_feats),
                        jnp.zeros((out_feats,), jnp.float32))
                  for i, rel in enumerate(rel_names)},
    }

    # ---- padded graph + inputs for the Pallas pipeline (lane-dense 128 multiples) ----
    graph = build_graph(adj_ui)
    f_in_pad = _round_up(in_feats, TILE)
    hid_pad = _round_up(hid_feats, TILE)
    out_pad = _round_up(out_feats, TILE)
    inputs = {t: _pad2d(inputs_raw[t], graph["node_pad"][t], f_in_pad)
              for t in ("user", "item")}

    out_padded = rgcn_forward(graph, inputs, params, hid_pad=hid_pad, out_pad=out_pad)
    out = {"user": out_padded["user"][:n_user, :out_feats],
           "item": out_padded["item"][:n_item, :out_feats]}
    out = {k: jax.block_until_ready(v) for k, v in out.items()}

    assert out["user"].shape == (n_user, out_feats)
    assert out["item"].shape == (n_item, out_feats)

    # numerical check vs. pure-JAX f32 reference (bf16 intermediates => loose tolerance)
    ref = reference_forward(adj_ui, inputs_raw, params)
    for t in ("user", "item"):
        assert jnp.allclose(out[t], ref[t], rtol=5e-2, atol=5e-2), f"mismatch for {t}"

    print("KERNEL_OK")
</pallas_src>

<mosaic_0001>
module attributes {stable_mosaic.version = 11 : i64} {
  func.func @_project_kernel(%arg0: i32, %arg1: i32, %arg2: i32, %arg3: memref<128x128xf32, #tpu.memory_space<vmem>>, %arg4: memref<128x128xf32, #tpu.memory_space<vmem>>, %arg5: memref<128x1xf32, #tpu.memory_space<vmem>>, %arg6: memref<128x128xbf16, #tpu.memory_space<vmem>>, %arg7: memref<128x128xf32, #tpu.memory_space<vmem>>) attributes {dimension_semantics = [#tpu.dimension_semantics<parallel>, #tpu.dimension_semantics<parallel>, #tpu.dimension_semantics<arbitrary>], iteration_bounds = array<i64: 1, 1, 1>, scalar_prefetch = 0 : i64, scratch_operands = 1 : i64, tpu.core_type = #tpu.core_type<tc>, window_params = [{transform_indices = @transform_0, window_bounds = array<i64: 128, 128>}, {transform_indices = @transform_1, window_bounds = array<i64: 128, 128>}, {transform_indices = @transform_2, window_bounds = array<i64: 128, 1>}, {transform_indices = @transform_3, window_bounds = array<i64: 128, 128>}]} {
    %c0_i32 = arith.constant 0 : i32
    %0 = arith.cmpi eq, %arg2, %c0_i32 : i32
    %1 = arith.extui %0 : i1 to i32
    %c0_i32_0 = arith.constant 0 : i32
    %2 = arith.cmpi ne, %1, %c0_i32_0 : i32
    scf.if %2 {
      %cst_10 = arith.constant 0.000000e+00 : f32
      %12 = vector.broadcast %cst_10 : f32 to vector<128x128xf32>
      %c0_11 = arith.constant 0 : index
      %c0_12 = arith.constant 0 : index
      %13 = vector.load %arg7[%c0_11, %c0_12] : memref<128x128xf32, #tpu.memory_space<vmem>>, vector<128x128xf32>
      tpu.vector_store %arg7[%c0_11, %c0_12], %12 {strides = array<i32>} : memref<128x128xf32, #tpu.memory_space<vmem>>, vector<128x128xf32>,
    } else {
    }
    %c0 = arith.constant 0 : index
    %c0_1 = arith.constant 0 : index
    %3 = vector.load %arg7[%c0, %c0_1] : memref<128x128xf32, #tpu.memory_space<vmem>>, vector<128x128xf32>
    %c0_2 = arith.constant 0 : index
    %c0_3 = arith.constant 0 : index
    %4 = vector.load %arg3[%c0_2, %c0_3] : memref<128x128xf32, #tpu.memory_space<vmem>>, vector<128x128xf32>
    %c0_4 = arith.constant 0 : index
    %c0_5 = arith.constant 0 : index
    %5 = vector.load %arg4[%c0_4, %c0_5] : memref<128x128xf32, #tpu.memory_space<vmem>>, vector<128x128xf32>
    %cst = arith.constant dense<0.000000e+00> : vector<128x128xf32>
    %6 = tpu.matmul %4, %5, %cst {dimension_numbers = #tpu.dot_dimension_numbers<[1], [0], [0], [1], [0, 0, 1, 1], [], []>} : vector<128x128xf32>, vector<128x128xf32>, vector<128x128xf32> -> vector<128x128xf32>
    %7 = arith.addf %3, %6 : vector<128x128xf32>
    %c0_6 = arith.constant 0 : index
    %c0_7 = arith.constant 0 : index
    %8 = vector.load %arg7[%c0_6, %c0_7] : memref<128x128xf32, #tpu.memory_space<vmem>>, vector<128x128xf32>
    tpu.vector_store %arg7[%c0_6, %c0_7], %7 {strides = array<i32>} : memref<128x128xf32, #tpu.memory_space<vmem>>, vector<128x128xf32>,
    %c0_i32_8 = arith.constant 0 : i32
    %9 = arith.cmpi eq, %arg2, %c0_i32_8 : i32
    %10 = arith.extui %9 : i1 to i32
    %c0_i32_9 = arith.constant 0 : i32
    %11 = arith.cmpi ne, %10, %c0_i32_9 : i32
    scf.if %11 {
      %c0_10 = arith.constant 0 : index
      %c0_11 = arith.constant 0 : index
      %12 = vector.load %arg7[%c0_10, %c0_11] : memref<128x128xf32, #tpu.memory_space<vmem>>, vector<128x128xf32>
      %c0_12 = arith.constant 0 : index
      %c0_13 = arith.constant 0 : index
      %13 = vector.load %arg5[%c0_12, %c0_13] : memref<128x1xf32, #tpu.memory_space<vmem>>, vector<128x1xf32>
      %14 = vector.broadcast %13 : vector<128x1xf32> to vector<128x128xf32>
      %15 = arith.mulf %12, %14 : vector<128x128xf32>
      %16 = arith.truncf %15 : vector<128x128xf32> to vector<128x128xbf16>
      %c0_14 = arith.constant 0 : index
      %c0_15 = arith.constant 0 : index
      %17 = vector.load %arg6[%c0_14, %c0_15] : memref<128x128xbf16, #tpu.memory_space<vmem>>, vector<128x128xbf16>
      tpu.vector_store %arg6[%c0_14, %c0_15], %16 {strides = array<i32>} : memref<128x128xbf16, #tpu.memory_space<vmem>>, vector<128x128xbf16>,
    } else {
    }
    return
  }
  func.func @transform_0(%arg0: i32, %arg1: i32, %arg2: i32) -> (i32, i32) {
    %c0_i32 = arith.constant 0 : i32
    return %arg0, %arg2 : i32, i32
  }
  func.func @transform_1(%arg0: i32, %arg1: i32, %arg2: i32) -> (i32, i32) {
    %c0_i32 = arith.constant 0 : i32
    return %arg2, %arg1 : i32, i32
  }
  func.func @transform_2(%arg0: i32, %arg1: i32, %arg2: i32) -> (i32, i32) {
    %c0_i32 = arith.constant 0 : i32
    %c0_i32_0 = arith.constant 0 : i32
    return %arg0, %c0_i32 : i32, i32
  }
  func.func @transform_3(%arg0: i32, %arg1: i32, %arg2: i32) -> (i32, i32) {
    %c0_i32 = arith.constant 0 : i32
    return %arg0, %arg1 : i32, i32
  }
}

</mosaic_0001>

<llo_original>
// kernel: tpu_custom_call.1
$region0: #{tpu_custom_call.1}
  #allocation0 [shape = 'u32[]', space=smem, size = 0x4, offset = 0x4, fixed_abs, tag = 'smem constant byte address 0x4 - core index']
  #allocation1 [shape = 'u32[72,128]{1,0:T(1,128)}', space=vmem, size = 0x9000, scoped, tag = 'internal scratch']
  #allocation2 [shape = 'f32[128,128]{1,0:T(8,128)}', space=vmem, size = 0x10000, scoped, tag = 'scratch operand']
  %s0 = inlined_call_operand.vmem [shape: f32[128,128], index: 0, kind: input, shape index: {}]
  %s1 = inlined_call_operand.hbm [shape: f32[128,128], index: 1, kind: input, shape index: {}]
  %s2 = inlined_call_operand.vmem [shape: f32[128,1], index: 2, kind: input, shape index: {}]
  %s3 = inlined_call_operand.hbm [shape: bf16[128,128], index: 3, kind: output, shape index: {}]
  %s4 = sld [smem:[#allocation0]]
  $region34: #{tpu_custom_call.1} parent=0
    _
  %s6 = ssub.s32 1, %s4
  %s7 = scalar_select 0, %s6, %s4
  $region1: #{tpu_custom_call.1} parent=0
    #allocation3 [shape = 'u8[65536]{0}', space=vmem, size = 0x10000, scoped, tag = 'input window, operand 1, single buffered']
    #allocation4 [shape = 's32[1]{0}', space=sflag, size = 0x4, scoped, tag = 'scoped memory for tpu_custom_call.1']
    #allocation5 [shape = 's32[1]{0}', space=sflag, size = 0x4, scoped, tag = 'scoped memory for tpu_custom_call.1']
    #allocation6 [shape = 'u8[32768]{0}', space=vmem, size = 0x8000, scoped, tag = 'output window, operand 0, single buffered']
    %8 = vsyncpa [#allocation4], 0
    %9 = vsyncpa [#allocation5], 0
    // Predicated region
    $region2: #{tpu_custom_call.1} parent=1 // pred_check
      _
    $region3: #{tpu_custom_call.1} parent=1 // pred_check_branch
      %11 = sbr.rel (0) target = $region5
    $region4: #{tpu_custom_call.1} parent=1 // pred_region
      _
    $region5: #{tpu_custom_call.1} parent=1 // pred_fallthru
      _
    // Predicated region
    $region6: #{tpu_custom_call.1} parent=1 // pred_check
      _
    $region7: #{tpu_custom_call.1} parent=1 // pred_check_branch
      %13 = sbr.rel (0) target = $region9
    $region8: #{tpu_custom_call.1} parent=1 // pred_region
      %15 = vsyncadd [#allocation4], 0
      %s16 = sshll.u32 %s1, 4
      %s17 = int_to_ptr.hbm [resolvable:$true] %s16
      %s18 = sshll.u32 [#allocation3], 4
      %s19 = int_to_ptr.vmem [resolvable:$true] %s18
      %24 = dma.hbm_to_vmem [thread:$0]  %s17, 2048, %s19, [#allocation4], 128, 128, 8
    $region9: #{tpu_custom_call.1} parent=1 // pred_fallthru
      _
    // Predicated region
    $region10: #{tpu_custom_call.1} parent=1 // pred_check
      _
    $region11: #{tpu_custom_call.1} parent=1 // pred_check_branch
      %26 = sbr.rel (0) target = $region13
    $region12: #{tpu_custom_call.1} parent=1 // pred_region
      _
    $region13: #{tpu_custom_call.1} parent=1 // pred_fallthru
      _
    // Predicated region
    $region14: #{tpu_custom_call.1} parent=1 // pred_check
      _
    $region15: #{tpu_custom_call.1} parent=1 // pred_check_branch
      %28 = sbr.rel (0) target = $region17
    $region16: #{tpu_custom_call.1} parent=1 // pred_region
      %30 = dma.done [#allocation4], 2048
    $region17: #{tpu_custom_call.1} parent=1 // pred_fallthru
      _
    %p31 = scmp.eq.s32.totalorder 0, 0
    // Predicated region
    $region18: #{tpu_custom_call.1} parent=1 // pred_check
      %p32 = pneg %p31
    $region19: #{tpu_custom_call.1} parent=1 // pred_check_branch
      %34 = sbr.rel (%p32) target = $region21
    $region20: #{tpu_custom_call.1} parent=1 // pred_region
      %35 = vst [vmem:[#allocation2] sm:$0xff] 0.0
      %36 = vst [vmem:[#allocation2 + $0x8] sm:$0xff] 0.0
      %37 = vst [vmem:[#allocation2 + $0x10] sm:$0xff] 0.0
      %38 = vst [vmem:[#allocation2 + $0x18] sm:$0xff] 0.0
      %39 = vst [vmem:[#allocation2 + $0x20] sm:$0xff] 0.0
      %40 = vst [vmem:[#allocation2 + $0x28] sm:$0xff] 0.0
      %41 = vst [vmem:[#allocation2 + $0x30] sm:$0xff] 0.0
      %42 = vst [vmem:[#allocation2 + $0x38] sm:$0xff] 0.0
      %43 = vst [vmem:[#allocation2 + $0x40] sm:$0xff] 0.0
      %44 = vst [vmem:[#allocation2 + $0x48] sm:$0xff] 0.0
      %45 = vst [vmem:[#allocation2 + $0x50] sm:$0xff] 0.0
      %46 = vst [vmem:[#allocation2 + $0x58] sm:$0xff] 0.0
      %47 = vst [vmem:[#allocation2 + $0x60] sm:$0xff] 0.0
      %48 = vst [vmem:[#allocation2 + $0x68] sm:$0xff] 0.0
      %49 = vst [vmem:[#allocation2 + $0x70] sm:$0xff] 0.0
      %50 = vst [vmem:[#allocation2 + $0x78] sm:$0xff] 0.0
    $region21: #{tpu_custom_call.1} parent=1 // pred_fallthru
      _
    %v51 = vld [vmem:[#allocation2] sm:$0xff]
    %v52 = vld [vmem:[#allocation2 + $0x8] sm:$0xff]
    %v53 = vld [vmem:[#allocation2 + $0x10] sm:$0xff]
    %v54 = vld [vmem:[#allocation2 + $0x18] sm:$0xff]
    %v55 = vld [vmem:[#allocation2 + $0x20] sm:$0xff]
    %v56 = vld [vmem:[#allocation2 + $0x28] sm:$0xff]
    %v57 = vld [vmem:[#allocation2 + $0x30] sm:$0xff]
    %v58 = vld [vmem:[#allocation2 + $0x38] sm:$0xff]
    %v59 = vld [vmem:[#allocation2 + $0x40] sm:$0xff]
    %v60 = vld [vmem:[#allocation2 + $0x48] sm:$0xff]
    %v61 = vld [vmem:[#allocation2 + $0x50] sm:$0xff]
    %v62 = vld [vmem:[#allocation2 + $0x58] sm:$0xff]
    %v63 = vld [vmem:[#allocation2 + $0x60] sm:$0xff]
    %v64 = vld [vmem:[#allocation2 + $0x68] sm:$0xff]
    %v65 = vld [vmem:[#allocation2 + $0x70] sm:$0xff]
    %v66 = vld [vmem:[#allocation2 + $0x78] sm:$0xff]
    %v67 = vld [vmem:[%s0] sm:$0xff]
    %v68 = vld [vmem:[%s0 + $0x8] sm:$0xff]
    %v69 = vld [vmem:[%s0 + $0x10] sm:$0xff]
    %v70 = vld [vmem:[%s0 + $0x18] sm:$0xff]
    %v71 = vld [vmem:[%s0 + $0x20] sm:$0xff]
    %v72 = vld [vmem:[%s0 + $0x28] sm:$0xff]
    %v73 = vld [vmem:[%s0 + $0x30] sm:$0xff]
    %v74 = vld [vmem:[%s0 + $0x38] sm:$0xff]
    %v75 = vld [vmem:[%s0 + $0x40] sm:$0xff]
    %v76 = vld [vmem:[%s0 + $0x48] sm:$0xff]
    %v77 = vld [vmem:[%s0 + $0x50] sm:$0xff]
    %v78 = vld [vmem:[%s0 + $0x58] sm:$0xff]
    %v79 = vld [vmem:[%s0 + $0x60] sm:$0xff]
    %v80 = vld [vmem:[%s0 + $0x68] sm:$0xff]
    %v81 = vld [vmem:[%s0 + $0x70] sm:$0xff]
    %v82 = vld [vmem:[%s0 + $0x78] sm:$0xff]
    %v83 = vld [vmem:[#allocation3] sm:$0xff]
    %v84 = vld [vmem:[#allocation3 + $0x8] sm:$0xff]
    %v85 = vld [vmem:[#allocation3 + $0x10] sm:$0xff]
    %v86 = vld [vmem:[#allocation3 + $0x18] sm:$0xff]
    %v87 = vld [vmem:[#allocation3 + $0x20] sm:$0xff]
    %v88 = vld [vmem:[#allocation3 + $0x28] sm:$0xff]
    %v89 = vld [vmem:[#allocation3 + $0x30] sm:$0xff]
    %v90 = vld [vmem:[#allocation3 + $0x38] sm:$0xff]
    %v91 = vld [vmem:[#allocation3 + $0x40] sm:$0xff]
    %v92 = vld [vmem:[#allocation3 + $0x48] sm:$0xff]
    %v93 = vld [vmem:[#allocation3 + $0x50] sm:$0xff]
    %v94 = vld [vmem:[#allocation3 + $0x58] sm:$0xff]
    %v95 = vld [vmem:[#allocation3 + $0x60] sm:$0xff]
    %v96 = vld [vmem:[#allocation3 + $0x68] sm:$0xff]
    %v97 = vld [vmem:[#allocation3 + $0x70] sm:$0xff]
    %v98 = vld [vmem:[#allocation3 + $0x78] sm:$0xff]
    %99 = vmatpush.msra.mxu0 %v98
    %100 = vmatpush.msra.mxu0 %v97
    %101 = vmatpush.msra.mxu0 %v96
    %102 = vmatpush.msra.mxu0 %v95
    %103 = vmatpush.msra.mxu0 %v94
    %104 = vmatpush.msra.mxu0 %v93
    %105 = vmatpush.msra.mxu0 %v92
    %106 = vmatpush.msra.mxu0 %v91
    %107 = vmatpush.msra.mxu0 %v90
    %108 = vmatpush.msra.mxu0 %v89
    %109 = vmatpush.msra.mxu0 %v88
    %110 = vmatpush.msra.mxu0 %v87
    %111 = vmatpush.msra.mxu0 %v86
    %112 = vmatpush.msra.mxu0 %v85
    %113 = vmatpush.msra.mxu0 %v84
    %114 = vmatpush.msra.mxu0 %v83
    %115 = vmatmul.f32.gmra.mxu0 %v67
    %v116 = vpop.f32.mrf.mxu0
    %v117 = vadd.f32 0.0, %v116
    %118 = vmatmul.f32.gmra.mxu0 %v68
    %v119 = vpop.f32.mrf.mxu0
    %v120 = vadd.f32 0.0, %v119
    %121 = vmatmul.f32.gmra.mxu0 %v69
    %v122 = vpop.f32.mrf.mxu0
    %v123 = vadd.f32 0.0, %v122
    %124 = vmatmul.f32.gmra.mxu0 %v70
    %v125 = vpop.f32.mrf.mxu0
    %v126 = vadd.f32 0.0, %v125
    %127 = vmatmul.f32.gmra.mxu0 %v71
    %v128 = vpop.f32.mrf.mxu0
    %v129 = vadd.f32 0.0, %v128
    %130 = vmatmul.f32.gmra.mxu0 %v72
    %v131 = vpop.f32.mrf.mxu0
    %v132 = vadd.f32 0.0, %v131
    %133 = vmatmul.f32.gmra.mxu0 %v73
    %v134 = vpop.f32.mrf.mxu0
    %v135 = vadd.f32 0.0, %v134
    %136 = vmatmul.f32.gmra.mxu0 %v74
    %v137 = vpop.f32.mrf.mxu0
    %v138 = vadd.f32 0.0, %v137
    %139 = vmatmul.f32.gmra.mxu0 %v75
    %v140 = vpop.f32.mrf.mxu0
    %v141 = vadd.f32 0.0, %v140
    %142 = vmatmul.f32.gmra.mxu0 %v76
    %v143 = vpop.f32.mrf.mxu0
    %v144 = vadd.f32 0.0, %v143
    %145 = vmatmul.f32.gmra.mxu0 %v77
    %v146 = vpop.f32.mrf.mxu0
    %v147 = vadd.f32 0.0, %v146
    %148 = vmatmul.f32.gmra.mxu0 %v78
    %v149 = vpop.f32.mrf.mxu0
    %v150 = vadd.f32 0.0, %v149
    %151 = vmatmul.f32.gmra.mxu0 %v79
    %v152 = vpop.f32.mrf.mxu0
    %v153 = vadd.f32 0.0, %v152
    %154 = vmatmul.f32.gmra.mxu0 %v80
    %v155 = vpop.f32.mrf.mxu0
    %v156 = vadd.f32 0.0, %v155
    %157 = vmatmul.f32.gmra.mxu0 %v81
    %v158 = vpop.f32.mrf.mxu0
    %v159 = vadd.f32 0.0, %v158
    %160 = vmatmul.f32.gmra.mxu0 %v82
    %v161 = vpop.f32.mrf.mxu0
    %v162 = vadd.f32 0.0, %v161
    %163 = vdwg.mxu0
    %v164 = vadd.f32 %v51, %v117
    %v165 = vadd.f32 %v52, %v120
    %v166 = vadd.f32 %v53, %v123
    %v167 = vadd.f32 %v54, %v126
    %v168 = vadd.f32 %v55, %v129
    %v169 = vadd.f32 %v56, %v132
    %v170 = vadd.f32 %v57, %v135
    %v171 = vadd.f32 %v58, %v138
    %v172 = vadd.f32 %v59, %v141
    %v173 = vadd.f32 %v60, %v144
    %v174 = vadd.f32 %v61, %v147
    %v175 = vadd.f32 %v62, %v150
    %v176 = vadd.f32 %v63, %v153
    %v177 = vadd.f32 %v64, %v156
    %v178 = vadd.f32 %v65, %v159
    %v179 = vadd.f32 %v66, %v162
    %180 = vst [vmem:[#allocation2] sm:$0xff] %v164
    %181 = vst [vmem:[#allocation2 + $0x8] sm:$0xff] %v165
    %182 = vst [vmem:[#allocation2 + $0x10] sm:$0xff] %v166
    %183 = vst [vmem:[#allocation2 + $0x18] sm:$0xff] %v167
    %184 = vst [vmem:[#allocation2 + $0x20] sm:$0xff] %v168
    %185 = vst [vmem:[#allocation2 + $0x28] sm:$0xff] %v169
    %186 = vst [vmem:[#allocation2 + $0x30] sm:$0xff] %v170
    %187 = vst [vmem:[#allocation2 + $0x38] sm:$0xff] %v171
    %188 = vst [vmem:[#allocation2 + $0x40] sm:$0xff] %v172
    %189 = vst [vmem:[#allocation2 + $0x48] sm:$0xff] %v173
    %190 = vst [vmem:[#allocation2 + $0x50] sm:$0xff] %v174
    %191 = vst [vmem:[#allocation2 + $0x58] sm:$0xff] %v175
    %192 = vst [vmem:[#allocation2 + $0x60] sm:$0xff] %v176
    %193 = vst [vmem:[#allocation2 + $0x68] sm:$0xff] %v177
    %194 = vst [vmem:[#allocation2 + $0x70] sm:$0xff] %v178
    %195 = vst [vmem:[#allocation2 + $0x78] sm:$0xff] %v179
    // Predicated region
    $region22: #{tpu_custom_call.1} parent=1 // pred_check
      %p196 = pneg %p31
    $region23: #{tpu_custom_call.1} parent=1 // pred_check_branch
      %198 = sbr.rel (%p196) target = $region25
    $region24: #{tpu_custom_call.1} parent=1 // pred_region
      %v199 = vld [vmem:[#allocation2] sm:$0xff]
      %v200 = vld [vmem:[#allocation2 + $0x8] sm:$0xff]
      %v201 = vld [vmem:[#allocation2 + $0x10] sm:$0xff]
      %v202 = vld [vmem:[#allocation2 + $0x18] sm:$0xff]
      %v203 = vld [vmem:[#allocation2 + $0x20] sm:$0xff]
      %v204 = vld [vmem:[#allocation2 + $0x28] sm:$0xff]
      %v205 = vld [vmem:[#allocation2 + $0x30] sm:$0xff]
      %v206 = vld [vmem:[#allocation2 + $0x38] sm:$0xff]
      %v207 = vld [vmem:[#allocation2 + $0x40] sm:$0xff]
      %v208 = vld [vmem:[#allocation2 + $0x48] sm:$0xff]
      %v209 = vld [vmem:[#allocation2 + $0x50] sm:$0xff]
      %v210 = vld [vmem:[#allocation2 + $0x58] sm:$0xff]
      %v211 = vld [vmem:[#allocation2 + $0x60] sm:$0xff]
      %v212 = vld [vmem:[#allocation2 + $0x68] sm:$0xff]
      %v213 = vld [vmem:[#allocation2 + $0x70] sm:$0xff]
      %v214 = vld [vmem:[#allocation2 + $0x78] sm:$0xff]
      %v215 = vld [vmem:[%s2] sm:$0xff]
      %v216 = vld [vmem:[%s2 + $0x8] sm:$0xff]
      %v217 = vld [vmem:[%s2 + $0x10] sm:$0xff]
      %v218 = vld [vmem:[%s2 + $0x18] sm:$0xff]
      %v219 = vld [vmem:[%s2 + $0x20] sm:$0xff]
      %v220 = vld [vmem:[%s2 + $0x28] sm:$0xff]
      %v221 = vld [vmem:[%s2 + $0x30] sm:$0xff]
      %v222 = vld [vmem:[%s2 + $0x38] sm:$0xff]
      %v223 = vld [vmem:[%s2 + $0x40] sm:$0xff]
      %v224 = vld [vmem:[%s2 + $0x48] sm:$0xff]
      %v225 = vld [vmem:[%s2 + $0x50] sm:$0xff]
      %v226 = vld [vmem:[%s2 + $0x58] sm:$0xff]
      %v227 = vld [vmem:[%s2 + $0x60] sm:$0xff]
      %v228 = vld [vmem:[%s2 + $0x68] sm:$0xff]
      %v229 = vld [vmem:[%s2 + $0x70] sm:$0xff]
      %v230 = vld [vmem:[%s2 + $0x78] sm:$0xff]
      %232 = vset.pattern.permute.xlu0 0
      %233 = vperm.xlu0 %232, %v215
      %v234 = vpop.permute.xlu0 %233
      %237 = vset.pattern.permute.xlu0 0
      %238 = vperm.xlu0 %237, %v216
      %v239 = vpop.permute.xlu0 %238
      %242 = vset.pattern.permute.xlu0 0
      %243 = vperm.xlu0 %242, %v217
      %v244 = vpop.permute.xlu0 %243
      %247 = vset.pattern.permute.xlu0 0
      %248 = vperm.xlu0 %247, %v218
      %v249 = vpop.permute.xlu0 %248
      %252 = vset.pattern.permute.xlu0 0
      %253 = vperm.xlu0 %252, %v219
      %v254 = vpop.permute.xlu0 %253
      %257 = vset.pattern.permute.xlu0 0
      %258 = vperm.xlu0 %257, %v220
      %v259 = vpop.permute.xlu0 %258
      %262 = vset.pattern.permute.xlu0 0
      %263 = vperm.xlu0 %262, %v221
      %v264 = vpop.permute.xlu0 %263
      %267 = vset.pattern.permute.xlu0 0
      %268 = vperm.xlu0 %267, %v222
      %v269 = vpop.permute.xlu0 %268
      %272 = vset.pattern.permute.xlu0 0
      %273 = vperm.xlu0 %272, %v223
      %v274 = vpop.permute.xlu0 %273
      %277 = vset.pattern.permute.xlu0 0
      %278 = vperm.xlu0 %277, %v224
      %v279 = vpop.permute.xlu0 %278
      %282 = vset.pattern.permute.xlu0 0
      %283 = vperm.xlu0 %282, %v225
      %v284 = vpop.permute.xlu0 %283
      %287 = vset.pattern.permute.xlu0 0
      %288 = vperm.xlu0 %287, %v226
      %v289 = vpop.permute.xlu0 %288
      %292 = vset.pattern.permute.xlu0 0
      %293 = vperm.xlu0 %292, %v227
      %v294 = vpop.permute.xlu0 %293
      %297 = vset.pattern.permute.xlu0 0
      %298 = vperm.xlu0 %297, %v228
      %v299 = vpop.permute.xlu0 %298
      %302 = vset.pattern.permute.xlu0 0
      %303 = vperm.xlu0 %302, %v229
      %v304 = vpop.permute.xlu0 %303
      %307 = vset.pattern.permute.xlu0 0
      %308 = vperm.xlu0 %307, %v230
      %v309 = vpop.permute.xlu0 %308
      %v311 = vmul.f32 %v199, %v234
      %v312 = vmul.f32 %v200, %v239
      %v313 = vmul.f32 %v201, %v244
      %v314 = vmul.f32 %v202, %v249
      %v315 = vmul.f32 %v203, %v254
      %v316 = vmul.f32 %v204, %v259
      %v317 = vmul.f32 %v205, %v264
      %v318 = vmul.f32 %v206, %v269
      %v319 = vmul.f32 %v207, %v274
      %v320 = vmul.f32 %v208, %v279
      %v321 = vmul.f32 %v209, %v284
      %v322 = vmul.f32 %v210, %v289
      %v323 = vmul.f32 %v211, %v294
      %v324 = vmul.f32 %v212, %v299
      %v325 = vmul.f32 %v213, %v304
      %v326 = vmul.f32 %v214, %v309
      %v327 = vpack.c.bf16 %v311, %v311
      %v328 = vpack.c.bf16 %v312, %v312
      %v329 = vpack.c.bf16 %v313, %v313
      %v330 = vpack.c.bf16 %v314, %v314
      %v331 = vpack.c.bf16 %v315, %v315
      %v332 = vpack.c.bf16 %v316, %v316
      %v333 = vpack.c.bf16 %v317, %v317
      %v334 = vpack.c.bf16 %v318, %v318
      %v335 = vpack.c.bf16 %v319, %v319
      %v336 = vpack.c.bf16 %v320, %v320
      %v337 = vpack.c.bf16 %v321, %v321
      %v338 = vpack.c.bf16 %v322, %v322
      %v339 = vpack.c.bf16 %v323, %v323
      %v340 = vpack.c.bf16 %v324, %v324
      %v341 = vpack.c.bf16 %v325, %v325
      %v342 = vpack.c.bf16 %v326, %v326
      %343 = vst [vmem:[#allocation6] sm:$0xf] %v327
      %344 = vst [vmem:[#allocation6 + $0x4] sm:$0xf] %v328
      %345 = vst [vmem:[#allocation6 + $0x8] sm:$0xf] %v329
      %346 = vst [vmem:[#allocation6 + $0xc] sm:$0xf] %v330
      %347 = vst [vmem:[#allocation6 + $0x10] sm:$0xf] %v331
      %348 = vst [vmem:[#allocation6 + $0x14] sm:$0xf] %v332
      %349 = vst [vmem:[#allocation6 + $0x18] sm:$0xf] %v333
      %350 = vst [vmem:[#allocation6 + $0x1c] sm:$0xf] %v334
      %351 = vst [vmem:[#allocation6 + $0x20] sm:$0xf] %v335
      %352 = vst [vmem:[#allocation6 + $0x24] sm:$0xf] %v336
      %353 = vst [vmem:[#allocation6 + $0x28] sm:$0xf] %v337
      %354 = vst [vmem:[#allocation6 + $0x2c] sm:$0xf] %v338
      %355 = vst [vmem:[#allocation6 + $0x30] sm:$0xf] %v339
      %356 = vst [vmem:[#allocation6 + $0x34] sm:$0xf] %v340
      %357 = vst [vmem:[#allocation6 + $0x38] sm:$0xf] %v341
      %358 = vst [vmem:[#allocation6 + $0x3c] sm:$0xf] %v342
    $region25: #{tpu_custom_call.1} parent=1 // pred_fallthru
      _
    // Predicated region
    $region26: #{tpu_custom_call.1} parent=1 // pred_check
      _
    $region27: #{tpu_custom_call.1} parent=1 // pred_check_branch
      %360 = sbr.rel (0) target = $region29
    $region28: #{tpu_custom_call.1} parent=1 // pred_region
      %362 = vsyncadd [#allocation5], 0
      %s363 = sshll.u32 [#allocation6], 4
      %s364 = int_to_ptr.vmem [resolvable:$true] %s363
      %s365 = sshll.u32 %s3, 4
      %s366 = int_to_ptr.hbm [resolvable:$true] %s365
      %371 = dma.vmem_to_hbm [thread:$0]  %s364, 1024, %s366, [#allocation5], 64, 64, 4
    $region29: #{tpu_custom_call.1} parent=1 // pred_fallthru
      _
    // Predicated region
    $region30: #{tpu_custom_call.1} parent=1 // pred_check
      _
    $region31: #{tpu_custom_call.1} parent=1 // pred_check_branch
      %373 = sbr.rel (0) target = $region33
    $region32: #{tpu_custom_call.1} parent=1 // pred_region
      %375 = dma.done [#allocation5], 1024
    $region33: #{tpu_custom_call.1} parent=1 // pred_fallthru
      _
    %376 = vsyncpa [#allocation4], 1
    %377 = vsyncpa [#allocation5], 1

</llo_original>
